<compile_context>
chip_gen: v5e
topology: v5e:2x2
jax: 0.10.0
libtpu: 0.0.40
codegen_flags: <defaults>
</compile_context>

<pallas_src>
import jax
import jax.numpy as jnp
from jax import lax
from jax.experimental import pallas as pl
from jax.experimental.pallas import tpu as pltpu


DEFAULT_TILE_B = 8192   # rows of x per grid step (sweep 8192-32768 for huge B)
SUB_B = 256             # rows per in-kernel sub-chunk (bounds live ranges)


def _round_up(v, m):
    return (v + m - 1) // m * m


def _make_kernel(sub_b, num_chunks):
    """Build the kernel with static sub-chunk size / count baked in."""

    def kernel(x_ref, w1_ref, b1_ref, w2_ref, b2_ref, w3_ref, b3_ref, o_ref):
        # Tiny resident weights/biases: load once per grid step.
        w1 = w1_ref[...]
        b1 = b1_ref[...]
        w2 = w2_ref[...]
        b2 = b2_ref[...]
        w3 = w3_ref[...]
        b3 = b3_ref[...]

        def chunk(c, carry):
            start = pl.multiple_of(c * sub_b, sub_b)
            x = x_ref[pl.ds(start, sub_b), :]

            # Layer 1: Linear(n_states, 32) + ReLU
            h1 = jnp.dot(x, w1, preferred_element_type=jnp.float32) + b1
            h1 = jnp.maximum(h1, 0.0)

            # Layer 2: Linear(32, 32) + tanh (EUP slot)
            h2 = jnp.tanh(jnp.dot(h1, w2, preferred_element_type=jnp.float32) + b2)

            # Layer 3: Linear(32, n_actions) + exact softmax over last dim.
            logits = jnp.dot(h2, w3, preferred_element_type=jnp.float32) + b3
            m = jnp.max(logits, axis=-1, keepdims=True)
            e = jnp.exp(logits - m)
            probs = e / jnp.sum(e, axis=-1, keepdims=True)  # exact: rows sum to 1

            o_ref[pl.ds(start, sub_b), :] = probs.astype(o_ref.dtype)
            return carry

        lax.fori_loop(0, num_chunks, chunk, 0)

    return kernel


def policy_net2_forward(x, params, tile_b=DEFAULT_TILE_B):
    """x: (B, n_states) float32. params: dict of w1,b1,w2,b2,w3,b3."""
    w1, b1, w2, b2, w3, b3 = (params["w1"], params["b1"], params["w2"],
                              params["b2"], params["w3"], params["b3"])
    B, n_states = x.shape
    n_actions = w3.shape[1]

    lane = lambda n: _round_up(max(int(n), 1), 128)
    # Lane-padded f32 bytes of one x row + one out row in VMEM.
    block_row_bytes = (lane(n_states) + lane(n_actions)) * 4

    # --- choose the batch tile ---------------------------------------------
    b8 = _round_up(max(B, 1), 8)
    if b8 <= SUB_B:
        tile_b = b8                                   # tiny batch: one small tile
    else:
        tile_b = min(_round_up(tile_b, SUB_B), _round_up(b8, SUB_B))
        # Keep >=2 grid steps on bigger batches so v7x's 2 TCs both get tiles.
        if b8 > 4 * SUB_B:
            tile_b = min(tile_b, _round_up(pl.cdiv(b8, 2), SUB_B))
        # Clamp so the double-buffered x+out blocks stay under ~48 MiB
        # (v7x physical VMEM is 64 MiB; v5e/v6e have 128 MiB).
        max_tile_vmem = ((48 << 20) // (2 * block_row_bytes)) // SUB_B * SUB_B
        tile_b = max(SUB_B, min(tile_b, max(SUB_B, max_tile_vmem)))

    sub_b = SUB_B if (tile_b >= SUB_B and tile_b % SUB_B == 0) else tile_b
    num_chunks = tile_b // sub_b

    padded_b = _round_up(B, tile_b)
    if padded_b != B:
        # Zero-pad tail rows: they produce valid uniform softmax rows that are
        # sliced off afterwards (no garbage reads, no NaNs).
        x = jnp.pad(x, ((0, padded_b - B), (0, 0)))
    grid = (padded_b // tile_b,)

    # Weights/biases: full-array blocks, same block every step -> VMEM-resident.
    def resident(a):
        return pl.BlockSpec(a.shape, lambda i: (0, 0))

    weights_bytes = 4 * sum(int(a.size) for a in (w1, b1, w2, b2, w3, b3))
    vmem_limit = 2 * tile_b * block_row_bytes + weights_bytes + (12 << 20)
    vmem_limit = int(max(16 << 20, min(vmem_limit, 56 << 20)))

    out = pl.pallas_call(
        _make_kernel(sub_b, num_chunks),
        out_shape=jax.ShapeDtypeStruct((padded_b, n_actions), jnp.float32),
        grid=grid,
        in_specs=[
            pl.BlockSpec((tile_b, n_states), lambda i: (i, 0)),  # pipelined x
            resident(w1), resident(b1),
            resident(w2), resident(b2),
            resident(w3), resident(b3),
        ],
        out_specs=pl.BlockSpec((tile_b, n_actions), lambda i: (i, 0)),
        compiler_params=pltpu.CompilerParams(
            dimension_semantics=("parallel",),   # batch tiles shard on v7x's 2 TCs
            vmem_limit_bytes=vmem_limit),
    )(x, w1, b1, w2, b2, w3, b3)

    return out[:B]


def init_params(key, n_states, n_actions):
    """Deterministic init mimicking torch.nn.Linear default (uniform +-1/sqrt(fan_in)).
    Weights stored as (in_features, out_features)."""
    def linear(k, fan_in, fan_out):
        kw, kb = jax.random.split(k)
        bound = 1.0 / jnp.sqrt(jnp.float32(fan_in))
        w = jax.random.uniform(kw, (fan_in, fan_out), jnp.float32, -bound, bound)
        b = jax.random.uniform(kb, (1, fan_out), jnp.float32, -bound, bound)
        return w, b

    k1, k2, k3 = jax.random.split(key, 3)
    w1, b1 = linear(k1, n_states, 32)
    w2, b2 = linear(k2, 32, 32)
    w3, b3 = linear(k3, 32, n_actions)
    return {"w1": w1, "b1": b1, "w2": w2, "b2": b2, "w3": w3, "b3": b3}


def reference_forward(x, params):
    h1 = jnp.maximum(x @ params["w1"] + params["b1"], 0.0)
    h2 = jnp.tanh(h1 @ params["w2"] + params["b2"])
    logits = h2 @ params["w3"] + params["b3"]
    return jax.nn.softmax(logits, axis=-1)


if __name__ == "__main__":
    key = jax.random.PRNGKey(0)
    n_states = 4      # CartPole-like observation dim
    n_actions = 2

    kp, kx1, kx2 = jax.random.split(key, 3)
    params = init_params(kp, n_states, n_actions)

    # Small batch: single tiny tile, one sub-chunk.
    batch1 = 8
    x1 = jax.random.normal(kx1, (batch1, n_states), jnp.float32)
    out1 = jax.block_until_ready(policy_net2_forward(x1, params))
    ref1 = reference_forward(x1, params)
    assert out1.shape == (batch1, n_actions)
    assert jnp.allclose(out1, ref1, atol=1e-3, rtol=1e-3)
    # Exact softmax divide -> rows sum to 1 to f32 rounding.
    assert jnp.allclose(jnp.sum(out1, axis=-1), 1.0, atol=1e-4)

    # Larger, non-tile-multiple batch: exercises multi-step grid, the inner
    # sub-chunk loop, and tail padding.
    batch2 = 2500
    x2 = jax.random.normal(kx2, (batch2, n_states), jnp.float32)
    out2 = jax.block_until_ready(policy_net2_forward(x2, params))
    ref2 = reference_forward(x2, params)
    assert out2.shape == (batch2, n_actions)
    assert jnp.allclose(out2, ref2, atol=1e-3, rtol=1e-3)
    assert jnp.allclose(jnp.sum(out2, axis=-1), 1.0, atol=1e-4)

    print("KERNEL_OK")
</pallas_src>

<mosaic_0001>
module attributes {stable_mosaic.version = 11 : i64} {
  func.func @kernel(%arg0: i32, %arg1: memref<8x4xf32, #tpu.memory_space<vmem>>, %arg2: memref<4x32xf32, #tpu.memory_space<vmem>>, %arg3: memref<1x32xf32, #tpu.memory_space<vmem>>, %arg4: memref<32x32xf32, #tpu.memory_space<vmem>>, %arg5: memref<1x32xf32, #tpu.memory_space<vmem>>, %arg6: memref<32x2xf32, #tpu.memory_space<vmem>>, %arg7: memref<1x2xf32, #tpu.memory_space<vmem>>, %arg8: memref<8x2xf32, #tpu.memory_space<vmem>>) attributes {dimension_semantics = [#tpu.dimension_semantics<parallel>], iteration_bounds = array<i64: 1>, scalar_prefetch = 0 : i64, scratch_operands = 0 : i64, tpu.core_type = #tpu.core_type<tc>, window_params = [{transform_indices = @transform_0, window_bounds = array<i64: 8, 4>}, {pipeline_mode = #tpu.pipeline_mode<synchronous>, transform_indices = @transform_1, window_bounds = array<i64: 4, 32>}, {pipeline_mode = #tpu.pipeline_mode<synchronous>, transform_indices = @transform_2, window_bounds = array<i64: 1, 32>}, {pipeline_mode = #tpu.pipeline_mode<synchronous>, transform_indices = @transform_3, window_bounds = array<i64: 32, 32>}, {pipeline_mode = #tpu.pipeline_mode<synchronous>, transform_indices = @transform_4, window_bounds = array<i64: 1, 32>}, {pipeline_mode = #tpu.pipeline_mode<synchronous>, transform_indices = @transform_5, window_bounds = array<i64: 32, 2>}, {pipeline_mode = #tpu.pipeline_mode<synchronous>, transform_indices = @transform_6, window_bounds = array<i64: 1, 2>}, {transform_indices = @transform_7, window_bounds = array<i64: 8, 2>}]} {
    %c0 = arith.constant 0 : index
    %c0_0 = arith.constant 0 : index
    %0 = vector.load %arg2[%c0, %c0_0] : memref<4x32xf32, #tpu.memory_space<vmem>>, vector<4x32xf32>
    %c0_1 = arith.constant 0 : index
    %c0_2 = arith.constant 0 : index
    %1 = vector.load %arg3[%c0_1, %c0_2] : memref<1x32xf32, #tpu.memory_space<vmem>>, vector<1x32xf32>
    %c0_3 = arith.constant 0 : index
    %c0_4 = arith.constant 0 : index
    %2 = vector.load %arg4[%c0_3, %c0_4] : memref<32x32xf32, #tpu.memory_space<vmem>>, vector<32x32xf32>
    %c0_5 = arith.constant 0 : index
    %c0_6 = arith.constant 0 : index
    %3 = vector.load %arg5[%c0_5, %c0_6] : memref<1x32xf32, #tpu.memory_space<vmem>>, vector<1x32xf32>
    %c0_7 = arith.constant 0 : index
    %c0_8 = arith.constant 0 : index
    %4 = vector.load %arg6[%c0_7, %c0_8] : memref<32x2xf32, #tpu.memory_space<vmem>>, vector<32x2xf32>
    %c0_9 = arith.constant 0 : index
    %c0_10 = arith.constant 0 : index
    %5 = vector.load %arg7[%c0_9, %c0_10] : memref<1x2xf32, #tpu.memory_space<vmem>>, vector<1x2xf32>
    %c0_i32 = arith.constant 0 : i32
    %c8_i32 = arith.constant 8 : i32
    %6 = arith.muli %c0_i32, %c8_i32 : i32
    %7 = tpu.assume_multiple %6, 8 : i32
    %8 = arith.index_cast %7 : i32 to index
    %c0_11 = arith.constant 0 : index
    %9 = vector.load %arg1[%8, %c0_11] : memref<8x4xf32, #tpu.memory_space<vmem>>, vector<8x4xf32>
    %cst = arith.constant dense<0.000000e+00> : vector<8x32xf32>
    %10 = tpu.matmul %9, %0, %cst {dimension_numbers = #tpu.dot_dimension_numbers<[1], [0], [0], [1], [0, 0, 1, 1], [], []>} : vector<8x4xf32>, vector<4x32xf32>, vector<8x32xf32> -> vector<8x32xf32>
    %11 = vector.broadcast %1 : vector<1x32xf32> to vector<8x32xf32>
    %12 = arith.addf %10, %11 : vector<8x32xf32>
    %cst_12 = arith.constant 0.000000e+00 : f32
    %13 = vector.broadcast %cst_12 : f32 to vector<8x32xf32>
    %14 = arith.maximumf %12, %13 : vector<8x32xf32>
    %cst_13 = arith.constant dense<0.000000e+00> : vector<8x32xf32>
    %15 = tpu.matmul %14, %2, %cst_13 {dimension_numbers = #tpu.dot_dimension_numbers<[1], [0], [0], [1], [0, 0, 1, 1], [], []>} : vector<8x32xf32>, vector<32x32xf32>, vector<8x32xf32> -> vector<8x32xf32>
    %16 = vector.broadcast %3 : vector<1x32xf32> to vector<8x32xf32>
    %17 = arith.addf %15, %16 : vector<8x32xf32>
    %18 = math.tanh %17 : vector<8x32xf32>
    %cst_14 = arith.constant dense<0.000000e+00> : vector<8x2xf32>
    %19 = tpu.matmul %18, %4, %cst_14 {dimension_numbers = #tpu.dot_dimension_numbers<[1], [0], [0], [1], [0, 0, 1, 1], [], []>} : vector<8x32xf32>, vector<32x2xf32>, vector<8x2xf32> -> vector<8x2xf32>
    %20 = vector.broadcast %5 : vector<1x2xf32> to vector<8x2xf32>
    %21 = arith.addf %19, %20 : vector<8x2xf32>
    %cst_15 = arith.constant dense<0xFF800000> : vector<8xf32>
    %22 = vector.multi_reduction <maximumf>, %21, %cst_15 [1] : vector<8x2xf32> to vector<8xf32>
    %23 = vector.shape_cast %22 : vector<8xf32> to vector<8x1xf32>
    %24 = vector.broadcast %23 : vector<8x1xf32> to vector<8x2xf32>
    %25 = arith.subf %21, %24 : vector<8x2xf32>
    %26 = math.exp %25 : vector<8x2xf32>
    %cst_16 = arith.constant dense<0.000000e+00> : vector<8xf32>
    %27 = vector.multi_reduction <add>, %26, %cst_16 [1] : vector<8x2xf32> to vector<8xf32>
    %28 = vector.shape_cast %27 : vector<8xf32> to vector<8x1xf32>
    %29 = vector.broadcast %28 : vector<8x1xf32> to vector<8x2xf32>
    %30 = arith.divf %26, %29 : vector<8x2xf32>
    %31 = arith.index_cast %7 : i32 to index
    %c0_17 = arith.constant 0 : index
    %32 = vector.load %arg8[%31, %c0_17] : memref<8x2xf32, #tpu.memory_space<vmem>>, vector<8x2xf32>
    tpu.vector_store %arg8[%31, %c0_17], %30 {strides = array<i32>} : memref<8x2xf32, #tpu.memory_space<vmem>>, vector<8x2xf32>,
    %c1_i32 = arith.constant 1 : i32
    return
  }
  func.func @transform_0(%arg0: i32) -> (i32, i32) {
    %c0_i32 = arith.constant 0 : i32
    %c0_i32_0 = arith.constant 0 : i32
    return %arg0, %c0_i32 : i32, i32
  }
  func.func @transform_1(%arg0: i32) -> (i32, i32) {
    %c0_i32 = arith.constant 0 : i32
    %c0_i32_0 = arith.constant 0 : i32
    %c0_i32_1 = arith.constant 0 : i32
    return %c0_i32, %c0_i32_0 : i32, i32
  }
  func.func @transform_2(%arg0: i32) -> (i32, i32) {
    %c0_i32 = arith.constant 0 : i32
    %c0_i32_0 = arith.constant 0 : i32
    %c0_i32_1 = arith.constant 0 : i32
    return %c0_i32, %c0_i32_0 : i32, i32
  }
  func.func @transform_3(%arg0: i32) -> (i32, i32) {
    %c0_i32 = arith.constant 0 : i32
    %c0_i32_0 = arith.constant 0 : i32
    %c0_i32_1 = arith.constant 0 : i32
    return %c0_i32, %c0_i32_0 : i32, i32
  }
  func.func @transform_4(%arg0: i32) -> (i32, i32) {
    %c0_i32 = arith.constant 0 : i32
    %c0_i32_0 = arith.constant 0 : i32
    %c0_i32_1 = arith.constant 0 : i32
    return %c0_i32, %c0_i32_0 : i32, i32
  }
  func.func @transform_5(%arg0: i32) -> (i32, i32) {
    %c0_i32 = arith.constant 0 : i32
    %c0_i32_0 = arith.constant 0 : i32
    %c0_i32_1 = arith.constant 0 : i32
    return %c0_i32, %c0_i32_0 : i32, i32
  }
  func.func @transform_6(%arg0: i32) -> (i32, i32) {
    %c0_i32 = arith.constant 0 : i32
    %c0_i32_0 = arith.constant 0 : i32
    %c0_i32_1 = arith.constant 0 : i32
    return %c0_i32, %c0_i32_0 : i32, i32
  }
  func.func @transform_7(%arg0: i32) -> (i32, i32) {
    %c0_i32 = arith.constant 0 : i32
    %c0_i32_0 = arith.constant 0 : i32
    return %arg0, %c0_i32 : i32, i32
  }
}

</mosaic_0001>

<llo_original>
// kernel: tpu_custom_call.1
$region0: #{tpu_custom_call.1}
  #allocation0 [shape = 'u32[]', space=smem, size = 0x4, offset = 0x4, fixed_abs, tag = 'smem constant byte address 0x4 - core index']
  #allocation1 [shape = 'u32[72,128]{1,0:T(1,128)}', space=vmem, size = 0x9000, scoped, tag = 'internal scratch']
  %s0 = inlined_call_operand.vmem [shape: f32[8,4], index: 0, kind: input, shape index: {}]
  %s1 = inlined_call_operand.vmem [shape: f32[4,32], index: 1, kind: input, shape index: {}]
  %s2 = inlined_call_operand.vmem [shape: f32[1,32], index: 2, kind: input, shape index: {}]
  %s3 = inlined_call_operand.vmem [shape: f32[32,32], index: 3, kind: input, shape index: {}]
  %s4 = inlined_call_operand.vmem [shape: f32[1,32], index: 4, kind: input, shape index: {}]
  %s5 = inlined_call_operand.vmem [shape: f32[32,2], index: 5, kind: input, shape index: {}]
  %s6 = inlined_call_operand.vmem [shape: f32[1,2], index: 6, kind: input, shape index: {}]
  %s7 = inlined_call_operand.vmem [shape: f32[8,2], index: 7, kind: output, shape index: {}]
  %s8 = sld [smem:[#allocation0]]
  $region38: #{tpu_custom_call.1} parent=0
    _
  %s10 = ssub.s32 1, %s8
  %s11 = scalar_select 0, %s10, %s8
  // Predicated region
  $region2: #{tpu_custom_call.1} parent=0 // pred_check
    _
  $region3: #{tpu_custom_call.1} parent=0 // pred_check_branch
    %13 = sbr.rel (0) target = $region5
  $region4: #{tpu_custom_call.1} parent=0 // pred_region
    _
  $region5: #{tpu_custom_call.1} parent=0 // pred_fallthru
    _
  // Predicated region
  $region6: #{tpu_custom_call.1} parent=0 // pred_check
    _
  $region7: #{tpu_custom_call.1} parent=0 // pred_check_branch
    %15 = sbr.rel (0) target = $region9
  $region8: #{tpu_custom_call.1} parent=0 // pred_region
    _
  $region9: #{tpu_custom_call.1} parent=0 // pred_fallthru
    _
  // Predicated region
  $region10: #{tpu_custom_call.1} parent=0 // pred_check
    _
  $region11: #{tpu_custom_call.1} parent=0 // pred_check_branch
    %17 = sbr.rel (0) target = $region13
  $region12: #{tpu_custom_call.1} parent=0 // pred_region
    _
  $region13: #{tpu_custom_call.1} parent=0 // pred_fallthru
    _
  // Predicated region
  $region14: #{tpu_custom_call.1} parent=0 // pred_check
    _
  $region15: #{tpu_custom_call.1} parent=0 // pred_check_branch
    %19 = sbr.rel (0) target = $region17
  $region16: #{tpu_custom_call.1} parent=0 // pred_region
    _
  $region17: #{tpu_custom_call.1} parent=0 // pred_fallthru
    _
  // Predicated region
  $region18: #{tpu_custom_call.1} parent=0 // pred_check
    _
  $region19: #{tpu_custom_call.1} parent=0 // pred_check_branch
    %21 = sbr.rel (0) target = $region21
  $region20: #{tpu_custom_call.1} parent=0 // pred_region
    _
  $region21: #{tpu_custom_call.1} parent=0 // pred_fallthru
    _
  // Predicated region
  $region22: #{tpu_custom_call.1} parent=0 // pred_check
    _
  $region23: #{tpu_custom_call.1} parent=0 // pred_check_branch
    %23 = sbr.rel (0) target = $region25
  $region24: #{tpu_custom_call.1} parent=0 // pred_region
    _
  $region25: #{tpu_custom_call.1} parent=0 // pred_fallthru
    _
  // Predicated region
  $region26: #{tpu_custom_call.1} parent=0 // pred_check
    _
  $region27: #{tpu_custom_call.1} parent=0 // pred_check_branch
    %25 = sbr.rel (0) target = $region29
  $region28: #{tpu_custom_call.1} parent=0 // pred_region
    _
  $region29: #{tpu_custom_call.1} parent=0 // pred_fallthru
    _
  %v26 = vld [vmem:[%s1] sm:$0xf]
  %v27 = vld [vmem:[%s2] sm:$0x1]
  %v28 = vld [vmem:[%s3] sm:$0xff]
  %v29 = vld [vmem:[%s3 + $0x8] sm:$0xff]
  %v30 = vld [vmem:[%s3 + $0x10] sm:$0xff]
  %v31 = vld [vmem:[%s3 + $0x18] sm:$0xff]
  %v32 = vld [vmem:[%s4] sm:$0x1]
  %v33 = vld [vmem:[%s5] sm:$0xff]
  %v34 = vld [vmem:[%s5 + $0x8] sm:$0xff]
  %v35 = vld [vmem:[%s5 + $0x10] sm:$0xff]
  %v36 = vld [vmem:[%s5 + $0x18] sm:$0xff]
  %v37 = vld [vmem:[%s6] sm:$0x1]
  %v38 = vld [vmem:[%s0] sm:$0xff]
  %v40 = vperm.slane %v27, 0
  %vm42 = vcmask 31744
  %v44 = vsel %vm42, %v38, 0
  %vm46 = vcmask 1043456
  %v48 = vsel %vm46, %v26, 0
  %50 = vmatpush.msra.mxu0 0.0
  %51 = vmatpush.msra.mxu0 0.0
  %52 = vmatpush.msra.mxu0 0.0
  %53 = vmatpush.msra.mxu0 0.0
  %54 = vmatpush.msra.mxu0 0.0
  %55 = vmatpush.msra.mxu0 0.0
  %56 = vmatpush.msra.mxu0 0.0
  %57 = vmatpush.msra.mxu0 0.0
  %58 = vmatpush.msra.mxu0 0.0
  %59 = vmatpush.msra.mxu0 0.0
  %60 = vmatpush.msra.mxu0 0.0
  %61 = vmatpush.msra.mxu0 0.0
  %62 = vmatpush.msra.mxu0 0.0
  %63 = vmatpush.msra.mxu0 0.0
  %64 = vmatpush.msra.mxu0 0.0
  %65 = vmatpush.msra.mxu0 %v48
  %66 = vmatmul.f32.gmra.mxu0 %v44
  %v67 = vpop.f32.mrf.mxu0
  %v68 = vadd.f32 %v40, %v67
  %69 = vdwg.mxu0
  %v70 = vmax.f32 %v68, 0.0
  %v72 = vperm.slane %v32, 0
  %vm74 = vcmask 261120
  %v76 = vsel %vm74, %v70, 0
  %78 = vmatpush.msra.mxu0 0.0
  %79 = vmatpush.msra.mxu0 0.0
  %80 = vmatpush.msra.mxu0 0.0
  %81 = vmatpush.msra.mxu0 0.0
  %82 = vmatpush.msra.mxu0 0.0
  %83 = vmatpush.msra.mxu0 0.0
  %84 = vmatpush.msra.mxu0 0.0
  %85 = vmatpush.msra.mxu0 0.0
  %86 = vmatpush.msra.mxu0 0.0
  %87 = vmatpush.msra.mxu0 0.0
  %88 = vmatpush.msra.mxu0 0.0
  %89 = vmatpush.msra.mxu0 0.0
  %90 = vmatpush.msra.mxu0 %v31
  %91 = vmatpush.msra.mxu0 %v30
  %92 = vmatpush.msra.mxu0 %v29
  %93 = vmatpush.msra.mxu0 %v28
  %94 = vmatmul.f32.gmra.mxu0 %v76
  %v95 = vpop.f32.mrf.mxu0
  %v96 = vadd.f32 %v72, %v95
  %97 = vdwg.mxu0
  %v98 = vtanh.pop %v96
  %v100 = vperm.slane %v37, 0
  %v103 = vsel %vm74, %v98, 0
  %105 = vmatpush.msra.mxu0 0.0
  %106 = vmatpush.msra.mxu0 0.0
  %107 = vmatpush.msra.mxu0 0.0
  %108 = vmatpush.msra.mxu0 0.0
  %109 = vmatpush.msra.mxu0 0.0
  %110 = vmatpush.msra.mxu0 0.0
  %111 = vmatpush.msra.mxu0 0.0
  %112 = vmatpush.msra.mxu0 0.0
  %113 = vmatpush.msra.mxu0 0.0
  %114 = vmatpush.msra.mxu0 0.0
  %115 = vmatpush.msra.mxu0 0.0
  %116 = vmatpush.msra.mxu0 0.0
  %117 = vmatpush.msra.mxu0 %v36
  %118 = vmatpush.msra.mxu0 %v35
  %119 = vmatpush.msra.mxu0 %v34
  %120 = vmatpush.msra.mxu0 %v33
  %121 = vmatmul.f32.gmra.mxu0 %v103
  %v122 = vpop.f32.mrf.mxu0
  %v123 = vadd.f32 %v100, %v122
  %124 = vdwg.mxu0
  %vm125 = vcmask 15360
  %v126 = vsel %vm125, %v123, -inf
  %127 = vmax.xlane.f32.xlu0 %v126
  %v128 = vpop.xlane.xlu0 %127
  %v129 = vsub.f32 %v123, %v128
  %v130 = vmul.f32 %v129, 1.442695
  %v131 = vpow.pop %v130
  %v132 = vsel %vm125, %v131, 0.0
  %133 = vadd.xlane.f32.xlu0 %v132
  %v134 = vpop.xlane.xlu0 %133
  %v135 = vrcp.pop %v134
  %v136 = vmul.f32 %v134, %v135
  %v137 = vsub.f32 1.0, %v136
  %v138 = vmul.f32 %v135, %v137
  %v139 = vadd.f32 %v135, %v138
  %vm140 = vweird.f32 %v134
  %vm141 = vweird.f32 %v135
  %vm142 = vmor %vm140, %vm141
  %v143 = vsel %vm142, %v135, %v139
  %v144 = vand.u32 2147483647, %v134
  %vm145 = vcmp.eq.f32.partialorder %v144, 8.507059e+37
  %v146 = vand.u32 %v134, 2147483648
  %v147 = vor.u32 1.1754944e-38, %v146
  %v148 = vsel %vm145, %v147, %v143
  %v149 = vmul.f32 %v131, %v148
  %150 = vst.msk [vmem:[%s7] sm:$0xff] %vm125, %v149
  // Predicated region
  $region30: #{tpu_custom_call.1} parent=0 // pred_check
    _
  $region31: #{tpu_custom_call.1} parent=0 // pred_check_branch
    %152 = sbr.rel (0) target = $region33
  $region32: #{tpu_custom_call.1} parent=0 // pred_region
    _
  $region33: #{tpu_custom_call.1} parent=0 // pred_fallthru
    _
  // Predicated region
  $region34: #{tpu_custom_call.1} parent=0 // pred_check
    _
  $region35: #{tpu_custom_call.1} parent=0 // pred_check_branch
    %154 = sbr.rel (0) target = $region37
  $region36: #{tpu_custom_call.1} parent=0 // pred_region
    _
  $region37: #{tpu_custom_call.1} parent=0 // pred_fallthru
    _

</llo_original>
